<compile_context>
chip_gen: v7x
topology: tpu7x:2x2x1
jax: 0.10.0
libtpu: 0.0.40
codegen_flags: <defaults>
</compile_context>

<pallas_src>
import functools

import jax
import jax.numpy as jnp
from jax.experimental import pallas as pl
from jax.experimental.pallas import tpu as pltpu

LANE = 128
# ~1 MiB per block; with double-buffered in + out that is ~4 MiB of VMEM,
# comfortably under every generation's default scoped-VMEM limit.
_TARGET_BLOCK_BYTES = 1 << 20
_WIDTH_CANDIDATES = (8192, 4096, 2048, 1024, 512, 256, 128)


def _lsq_kernel(s_ref, x_ref, o_ref, *, qn, qp):
    # s_ref: SMEM (1,) f32 scale.  x_ref / o_ref: VMEM tiles in the input dtype.
    s = s_ref[0]
    inv_s = 1.0 / s                      # exact scalar reciprocal, once per block
    x = x_ref[...].astype(jnp.float32)   # compute in f32 (v5e VPU has no bf16)
    xq = jnp.clip(x * inv_s, jnp.float32(qn), jnp.float32(qp))
    x_bar = jnp.round(xq)                # round-half-to-even == torch.round
    o_ref[...] = (x_bar * s).astype(o_ref.dtype)


class LSQQuantizerPallas:
    """JAX/Pallas re-implementation of LSQ_Quantizer (forward pass)."""

    # TODO(synk): training use would need jax.custom_vjp for the grad_scale /
    # straight-through-estimator backward semantics; only forward is implemented.

    def __init__(self, bit_width, is_activation=False):
        self.bit_width = bit_width
        if is_activation:
            self.Qn = 0
            self.Qp = 2 ** bit_width - 1
        else:
            self.Qn = -(2 ** (bit_width - 1))
            self.Qp = 2 ** (bit_width - 1) - 1
        # torch.nn.Parameter(torch.ones(1)) -> deterministic init
        self.s = jnp.ones((1,), dtype=jnp.float32)

    def __call__(self, x):
        orig_shape = x.shape
        orig_dtype = x.dtype
        n = x.size

        # Pick the widest lane-dense last dim that divides the element count so
        # the kernel reads/writes the original buffer with no pad/slice passes.
        width = None
        for w in _WIDTH_CANDIDATES:
            if n % w == 0:
                width = w
                break

        if width is not None:
            padded = False
            x2d = x.reshape(n // width, width)          # contiguous view, no copy pass
        else:
            # Rare ragged path: pad the flat stream up to a 128-multiple.
            padded = True
            width = LANE
            pad_to = pl.cdiv(n, LANE) * LANE
            x2d = jnp.pad(x.reshape(-1), (0, pad_to - n)).reshape(pad_to // LANE, width)

        rows = x2d.shape[0]
        elt_bytes = jnp.dtype(orig_dtype).itemsize

        # ~1 MiB blocks; block sublane dim must be a multiple of 8 or the full extent.
        tile_rows = _TARGET_BLOCK_BYTES // (width * elt_bytes)
        if tile_rows >= rows:
            tile_rows = rows
        else:
            tile_rows = max(8, (tile_rows // 8) * 8)
        grid = (pl.cdiv(rows, tile_rows),)

        kernel = functools.partial(_lsq_kernel, qn=self.Qn, qp=self.Qp)

        x_hat_2d = pl.pallas_call(
            kernel,
            out_shape=jax.ShapeDtypeStruct((rows, width), orig_dtype),
            grid_spec=pltpu.PrefetchScalarGridSpec(
                num_scalar_prefetch=0,
                grid=grid,
                in_specs=[
                    pl.BlockSpec(memory_space=pltpu.SMEM),               # s (scalar)
                    pl.BlockSpec((tile_rows, width), lambda i: (i, 0)),  # x tile
                ],
                out_specs=pl.BlockSpec((tile_rows, width), lambda i: (i, 0)),
            ),
            compiler_params=pltpu.CompilerParams(
                dimension_semantics=("parallel",)),
            cost_estimate=pl.CostEstimate(
                flops=5 * rows * width,
                transcendentals=0,
                bytes_accessed=2 * rows * width * elt_bytes + 4),
        )(self.s.astype(jnp.float32), x2d)

        if padded:
            x_hat = x_hat_2d.reshape(-1)[:n].reshape(orig_shape)
        else:
            x_hat = x_hat_2d.reshape(orig_shape)

        scale = self.s                                  # forward value of grad_scale(s, .)
        bw = jnp.array([float(self.bit_width)], dtype=jnp.float32)
        return x_hat, scale, bw


def _reference(x, s, qn, qp):
    xq = jnp.clip(x.astype(jnp.float32) / s[0], qn, qp)
    return (jnp.round(xq) * s[0]).astype(x.dtype)


if __name__ == "__main__":
    key = jax.random.PRNGKey(0)

    # Weight quantizer, lane-dense path (2048 elements -> (1, 2048) view).
    x = jax.random.normal(key, (2, 4, 16, 16), dtype=jnp.float32) * 3.0
    quantizer = LSQQuantizerPallas(bit_width=4, is_activation=False)
    x_hat, scale, bw = quantizer(x)
    jax.block_until_ready(x_hat)
    ref = _reference(x, quantizer.s, quantizer.Qn, quantizer.Qp)
    assert x_hat.shape == x.shape and x_hat.dtype == x.dtype
    assert scale.shape == (1,) and bw.shape == (1,)
    assert jnp.allclose(x_hat, ref, atol=1e-6), "mismatch vs reference (weight path)"

    # Activation quantizer, ragged element count (exercises the pad fallback).
    key2 = jax.random.PRNGKey(0)
    y = jax.random.normal(key2, (2, 3, 5, 7), dtype=jnp.float32) * 2.0
    act_q = LSQQuantizerPallas(bit_width=4, is_activation=True)
    y_hat, y_scale, y_bw = act_q(y)
    jax.block_until_ready(y_hat)
    y_ref = _reference(y, act_q.s, act_q.Qn, act_q.Qp)
    assert y_hat.shape == y.shape
    assert jnp.allclose(y_hat, y_ref, atol=1e-6), "mismatch vs reference (act path)"

    print("KERNEL_OK")
</pallas_src>

<mosaic_0001>
module attributes {stable_mosaic.version = 11 : i64} {
  func.func @_lsq_kernel(%arg0: i32, %arg1: memref<1xf32, #tpu.memory_space<smem>>, %arg2: memref<1x2048xf32, #tpu.memory_space<vmem>>, %arg3: memref<1x2048xf32, #tpu.memory_space<vmem>>) attributes {dimension_semantics = [#tpu.dimension_semantics<parallel>], iteration_bounds = array<i64: 1>, scalar_prefetch = 0 : i64, scratch_operands = 0 : i64, tpu.core_type = #tpu.core_type<tc>, window_params = [{transform_indices = @transform_0, window_bounds = array<i64: 1>}, {transform_indices = @transform_1, window_bounds = array<i64: 1, 2048>}, {transform_indices = @transform_2, window_bounds = array<i64: 1, 2048>}]} {
    %c0 = arith.constant 0 : index
    %0 = memref.load %arg1[%c0] : memref<1xf32, #tpu.memory_space<smem>>
    %cst = arith.constant 1.000000e+00 : f32
    %1 = arith.divf %cst, %0 : f32
    %c0_0 = arith.constant 0 : index
    %c0_1 = arith.constant 0 : index
    %2 = vector.load %arg2[%c0_0, %c0_1] : memref<1x2048xf32, #tpu.memory_space<vmem>>, vector<1x2048xf32>
    %3 = vector.broadcast %1 : f32 to vector<1x2048xf32>
    %4 = arith.mulf %2, %3 : vector<1x2048xf32>
    %cst_2 = arith.constant -8.000000e+00 : f32
    %cst_3 = arith.constant 7.000000e+00 : f32
    %5 = vector.broadcast %cst_2 : f32 to vector<1x2048xf32>
    %6 = arith.maximumf %5, %4 : vector<1x2048xf32>
    %7 = vector.broadcast %cst_3 : f32 to vector<1x2048xf32>
    %8 = arith.minimumf %7, %6 : vector<1x2048xf32>
    %9 = math.roundeven %8 : vector<1x2048xf32>
    %10 = vector.broadcast %0 : f32 to vector<1x2048xf32>
    %11 = arith.mulf %9, %10 : vector<1x2048xf32>
    %c0_4 = arith.constant 0 : index
    %c0_5 = arith.constant 0 : index
    %12 = vector.load %arg3[%c0_4, %c0_5] : memref<1x2048xf32, #tpu.memory_space<vmem>>, vector<1x2048xf32>
    tpu.vector_store %arg3[%c0_4, %c0_5], %11 {strides = array<i32>} : memref<1x2048xf32, #tpu.memory_space<vmem>>, vector<1x2048xf32>,
    return
  }
  func.func @transform_0(%arg0: i32) -> i32 {
    %c0_i32 = arith.constant 0 : i32
    %c0_i32_0 = arith.constant 0 : i32
    return %c0_i32 : i32
  }
  func.func @transform_1(%arg0: i32) -> (i32, i32) {
    %c0_i32 = arith.constant 0 : i32
    %c0_i32_0 = arith.constant 0 : i32
    return %arg0, %c0_i32 : i32, i32
  }
  func.func @transform_2(%arg0: i32) -> (i32, i32) {
    %c0_i32 = arith.constant 0 : i32
    %c0_i32_0 = arith.constant 0 : i32
    return %arg0, %c0_i32 : i32, i32
  }
}

</mosaic_0001>

<llo_original>
// kernel: tpu_custom_call.1
$region0: #{tpu_custom_call.1}
  #allocation0 [shape = 'u32[]', space=smem, size = 0x4, offset = 0x4, fixed_abs, tag = 'smem constant byte address 0x4 - core index']
  #allocation1 [shape = 'u32[144,128]{1,0:T(1,128)}', space=vmem, size = 0x12000, scoped, tag = 'internal scratch']
  #allocation2 [shape = 'f32[1]{0:T(128)S(6)}', space=smem, size = 0x200, scoped, tag = 'scoped memory for tpu_custom_call.1']
  %s0 = inlined_call_operand.<no memory space> [shape: f32[1], index: 0, kind: input, shape index: {}]
  %s1 = inlined_call_operand.hbm [shape: f32[1,2048], index: 1, kind: input, shape index: {}]
  %s2 = inlined_call_operand.hbm [shape: f32[1,2048], index: 2, kind: output, shape index: {}]
  %s3 = sld [smem:[#allocation0]]
  $region22: #{tpu_custom_call.1} parent=0
    _
  %s5 = ssub.s32 1, %s3
  %s6 = scalar_select 0, %s5, %s3
  %7 = sst [smem:[#allocation2]] %s0
  $region1: #{tpu_custom_call.1} parent=0
    #allocation3 [shape = 'u8[8192]{0}', space=vmem, size = 0x2000, scoped, tag = 'input window, operand 1, single buffered']
    #allocation4 [shape = 's32[1]{0}', space=sflag, size = 0x4, scoped, tag = 'scoped memory for tpu_custom_call.1']
    #allocation5 [shape = 's32[1]{0}', space=sflag, size = 0x4, scoped, tag = 'scoped memory for tpu_custom_call.1']
    #allocation6 [shape = 'u8[8192]{0}', space=vmem, size = 0x2000, scoped, tag = 'output window, operand 0, single buffered']
    %8 = vsyncpa [#allocation4], 0
    %9 = vsyncpa [#allocation5], 0
    // Predicated region
    $region2: #{tpu_custom_call.1} parent=1 // pred_check
      _
    $region3: #{tpu_custom_call.1} parent=1 // pred_check_branch
      %11 = sbr.rel (0) target = $region5
    $region4: #{tpu_custom_call.1} parent=1 // pred_region
      _
    $region5: #{tpu_custom_call.1} parent=1 // pred_fallthru
      _
    // Predicated region
    $region6: #{tpu_custom_call.1} parent=1 // pred_check
      _
    $region7: #{tpu_custom_call.1} parent=1 // pred_check_branch
      %13 = sbr.rel (0) target = $region9
    $region8: #{tpu_custom_call.1} parent=1 // pred_region
      %s15 = ssub.s32 256, 256
      %16 = vsyncadd [#allocation4], %s15
      %s18 = sshll.u32 [#allocation3], 4
      %s19 = int_to_ptr.vmem [resolvable:$true] %s18
      %21 = dma.hbm_to_vmem [thread:$0]  %s1, 256, %s19, [#allocation4]
    $region9: #{tpu_custom_call.1} parent=1 // pred_fallthru
      _
    // Predicated region
    $region10: #{tpu_custom_call.1} parent=1 // pred_check
      _
    $region11: #{tpu_custom_call.1} parent=1 // pred_check_branch
      %23 = sbr.rel (0) target = $region13
    $region12: #{tpu_custom_call.1} parent=1 // pred_region
      %24 = dma.done [#allocation4], 256
    $region13: #{tpu_custom_call.1} parent=1 // pred_fallthru
      _
    %s25 = sld [smem:[#allocation2]]
    %v26 = vstv %s25
    %v27 = vrcp.pop %v26
    %s28 = vtos %v27
    %v29 = vld [vmem:[#allocation3] sm:$0xff]
    %v30 = vld [vmem:[#allocation3 + $0x8] sm:$0xff]
    %v31 = vstv %s28
    %v32 = vmul.f32 %v29, %v31
    %v33 = vmul.f32 %v30, %v31
    %v34 = vmax.f32 %v32, -8.0
    %v35 = vmax.f32 %v33, -8.0
    %v36 = vmin.f32 %v34, 7.0
    %v37 = vmin.f32 %v35, 7.0
    %v38 = vround.ne.pseudo %v36
    %v39 = vround.ne.pseudo %v37
    %v40 = vstv %s25
    %v41 = vmul.f32 %v38, %v40
    %v42 = vmul.f32 %v39, %v40
    %43 = vst [vmem:[#allocation6] sm:$0xff] %v41
    %44 = vst [vmem:[#allocation6 + $0x8] sm:$0xff] %v42
    // Predicated region
    $region14: #{tpu_custom_call.1} parent=1 // pred_check
      _
    $region15: #{tpu_custom_call.1} parent=1 // pred_check_branch
      %46 = sbr.rel (0) target = $region17
    $region16: #{tpu_custom_call.1} parent=1 // pred_region
      %s48 = ssub.s32 256, 256
      %49 = vsyncadd [#allocation5], %s48
      %s51 = sshll.u32 [#allocation6], 4
      %s52 = int_to_ptr.vmem [resolvable:$true] %s51
      %54 = dma.vmem_to_hbm [thread:$0]  %s52, 256, %s2, [#allocation5]
    $region17: #{tpu_custom_call.1} parent=1 // pred_fallthru
      _
    // Predicated region
    $region18: #{tpu_custom_call.1} parent=1 // pred_check
      _
    $region19: #{tpu_custom_call.1} parent=1 // pred_check_branch
      %56 = sbr.rel (0) target = $region21
    $region20: #{tpu_custom_call.1} parent=1 // pred_region
      %57 = dma.done [#allocation5], 256
    $region21: #{tpu_custom_call.1} parent=1 // pred_fallthru
      _
    %58 = vsyncpa [#allocation4], 1
    %59 = vsyncpa [#allocation5], 1

</llo_original>
